<compile_context>
chip_gen: v6e
topology: v6e:2x2x1
jax: 0.10.0
libtpu: 0.0.40
codegen_flags: <defaults>
</compile_context>

<pallas_src>
import functools

import jax
import jax.numpy as jnp
from jax.experimental import pallas as pl
from jax.experimental.pallas import tpu as pltpu


def _center_loss_kernel(feat_ref, lbl_ref, centers_ref, out_ref):
    """Per-tile partial sum of squared distances to the selected centers."""
    feat = feat_ref[...].astype(jnp.float32)          # (TB, D)
    lbl = lbl_ref[...]                                # (TB, 1) int32
    centers = centers_ref[...].astype(jnp.float32)    # (K, D)

    tb, d = feat.shape
    k = centers.shape[0]

    # Gather centers[y] as a one-hot matmul on the MXU.
    class_ids = jax.lax.broadcasted_iota(jnp.int32, (tb, k), 1)   # (TB, K)
    onehot = (class_ids == lbl).astype(jnp.float32)               # (TB, K)
    centers_pred = jnp.dot(onehot, centers,
                           preferred_element_type=jnp.float32)    # (TB, D)

    diff = feat - centers_pred
    tile_sum = jnp.sum(diff * diff)                               # scalar

    # Lane-dense (1, 128) output block: broadcast the partial sum; the wrapper
    # reads lane 0 of each tile and reduces + scales outside the kernel.
    out_ref[...] = jnp.broadcast_to(tile_sum, out_ref.shape).astype(jnp.float32)


def _pick_tile_rows(n, d, num_classes):
    """Largest batch tile that (a) divides N and (b) stays well under the
    v7x-safe scoped-VMEM budget for the double-buffered feat tile plus the
    in-kernel (TB, K) one-hot and (TB, D) diff temporaries."""
    budget_bytes = 12 * 1024 * 1024
    per_row_bytes = 4 * (2 * d + num_classes + d)   # 2x feat (dbl-buf) + onehot + diff
    cap = max(8, budget_bytes // max(per_row_bytes, 1))
    cap = min(cap, 1024, n)
    # Largest divisor of n that is <= cap (prefer multiples of 8).
    for r in range(cap, 0, -1):
        if n % r == 0 and (r % 8 == 0 or r == n or r >= n):
            return r
    for r in range(cap, 0, -1):
        if n % r == 0:
            return r
    return n


def center_loss(feat, label, centers, tile_rows=None):
    """feat: (N, D) float; label: (N,) int; centers: (K, D) float -> scalar f32."""
    n = feat.shape[0]
    feat2d = feat.reshape(n, -1)                      # mirrors view(B,1,1,-1).squeeze()
    d = feat2d.shape[1]
    k, d2 = centers.shape
    if d != d2:
        raise ValueError(
            "Center's dim: {0} should be equal to input feature's dim: {1}".format(d2, d))

    if tile_rows is None:
        tile_rows = _pick_tile_rows(n, d, k)
    assert n % tile_rows == 0, "N must be divisible by tile_rows"
    num_tiles = n // tile_rows

    lbl2d = label.astype(jnp.int32).reshape(n, 1)

    cost = pl.CostEstimate(
        flops=2 * n * k * d + 3 * n * d,
        transcendentals=0,
        bytes_accessed=feat2d.size * 4 + lbl2d.size * 4 + centers.size * 4
        + num_tiles * 128 * 4,
    )

    partials = pl.pallas_call(
        _center_loss_kernel,
        out_shape=jax.ShapeDtypeStruct((num_tiles, 128), jnp.float32),
        grid=(num_tiles,),
        in_specs=[
            pl.BlockSpec((tile_rows, d), lambda i: (i, 0)),   # feat tile
            pl.BlockSpec((tile_rows, 1), lambda i: (i, 0)),   # labels tile
            pl.BlockSpec((k, d), lambda i: (0, 0)),           # centers, resident
        ],
        out_specs=pl.BlockSpec((1, 128), lambda i: (i, 0)),   # per-tile partial sum
        compiler_params=pltpu.CompilerParams(
            dimension_semantics=("parallel",),                # independent tiles
        ),
        cost_estimate=cost,
    )(feat2d, lbl2d, centers)

    # Final reduction + mean + /2 folded into a single reciprocal multiply.
    return jnp.sum(partials[:, 0]) * jnp.float32(0.5 / n)


def _reference(feat, label, centers):
    feat2d = feat.reshape(feat.shape[0], -1)
    centers_pred = centers[label]
    return jnp.mean(jnp.sum((feat2d - centers_pred) ** 2, axis=1)) / 2.0


if __name__ == "__main__":
    key = jax.random.PRNGKey(0)
    kf, ky, kc = jax.random.split(key, 3)

    N, D, K = 16, 32, 10  # small demo: batch=16, feat_dim=32, num_classes=10
    feat = jax.random.normal(kf, (N, D), dtype=jnp.float32)
    label = jax.random.randint(ky, (N,), 0, K, dtype=jnp.int32)
    # kaiming_uniform-ish init for centers (exact init is irrelevant to the kernel)
    bound = (6.0 / D) ** 0.5
    centers = jax.random.uniform(kc, (K, D), dtype=jnp.float32,
                                 minval=-bound, maxval=bound)

    loss = center_loss(feat, label, centers)
    loss = jax.block_until_ready(loss)

    ref = _reference(feat, label, centers)
    assert jnp.allclose(loss, ref, atol=1e-5, rtol=1e-5), (loss, ref)

    print("KERNEL_OK")
</pallas_src>

<mosaic_0001>
module attributes {stable_mosaic.version = 11 : i64} {
  func.func @_center_loss_kernel(%arg0: i32, %arg1: memref<16x32xf32, #tpu.memory_space<vmem>>, %arg2: memref<16x1xi32, #tpu.memory_space<vmem>>, %arg3: memref<10x32xf32, #tpu.memory_space<vmem>>, %arg4: memref<1x128xf32, #tpu.memory_space<vmem>>) attributes {dimension_semantics = [#tpu.dimension_semantics<parallel>], iteration_bounds = array<i64: 1>, scalar_prefetch = 0 : i64, scratch_operands = 0 : i64, tpu.core_type = #tpu.core_type<tc>, window_params = [{transform_indices = @transform_0, window_bounds = array<i64: 16, 32>}, {transform_indices = @transform_1, window_bounds = array<i64: 16, 1>}, {pipeline_mode = #tpu.pipeline_mode<synchronous>, transform_indices = @transform_2, window_bounds = array<i64: 10, 32>}, {transform_indices = @transform_3, window_bounds = array<i64: 1, 128>}]} {
    %c0 = arith.constant 0 : index
    %c0_0 = arith.constant 0 : index
    %0 = vector.load %arg1[%c0, %c0_0] : memref<16x32xf32, #tpu.memory_space<vmem>>, vector<16x32xf32>
    %c0_1 = arith.constant 0 : index
    %c0_2 = arith.constant 0 : index
    %1 = vector.load %arg2[%c0_1, %c0_2] : memref<16x1xi32, #tpu.memory_space<vmem>>, vector<16x1xi32>
    %c0_3 = arith.constant 0 : index
    %c0_4 = arith.constant 0 : index
    %2 = vector.load %arg3[%c0_3, %c0_4] : memref<10x32xf32, #tpu.memory_space<vmem>>, vector<10x32xf32>
    %3 = tpu.iota {dimensions = array<i32: 1>} : vector<16x10xi32>
    %4 = vector.broadcast %1 : vector<16x1xi32> to vector<16x10xi32>
    %5 = arith.cmpi eq, %3, %4 : vector<16x10xi32>
    %6 = arith.extui %5 : vector<16x10xi1> to vector<16x10xi32>
    %7 = arith.sitofp %6 : vector<16x10xi32> to vector<16x10xf32>
    %cst = arith.constant dense<0.000000e+00> : vector<16x32xf32>
    %8 = tpu.matmul %7, %2, %cst {dimension_numbers = #tpu.dot_dimension_numbers<[1], [0], [0], [1], [0, 0, 1, 1], [], []>} : vector<16x10xf32>, vector<10x32xf32>, vector<16x32xf32> -> vector<16x32xf32>
    %9 = arith.subf %0, %8 : vector<16x32xf32>
    %10 = arith.mulf %9, %9 : vector<16x32xf32>
    %11 = vector.shape_cast %10 : vector<16x32xf32> to vector<1x16x32xf32>
    %cst_5 = arith.constant dense<0.000000e+00> : vector<1xf32>
    %12 = vector.multi_reduction <add>, %11, %cst_5 [1, 2] : vector<1x16x32xf32> to vector<1xf32>
    %13 = vector.shape_cast %12 : vector<1xf32> to vector<1x1x1xf32>
    %14 = vector.extract %13[0, 0, 0] : f32 from vector<1x1x1xf32>
    %15 = vector.broadcast %14 : f32 to vector<1x128xf32>
    %c0_6 = arith.constant 0 : index
    %c0_7 = arith.constant 0 : index
    %16 = vector.load %arg4[%c0_6, %c0_7] : memref<1x128xf32, #tpu.memory_space<vmem>>, vector<1x128xf32>
    tpu.vector_store %arg4[%c0_6, %c0_7], %15 {strides = array<i32>} : memref<1x128xf32, #tpu.memory_space<vmem>>, vector<1x128xf32>,
    return
  }
  func.func @transform_0(%arg0: i32) -> (i32, i32) {
    %c0_i32 = arith.constant 0 : i32
    %c0_i32_0 = arith.constant 0 : i32
    return %arg0, %c0_i32 : i32, i32
  }
  func.func @transform_1(%arg0: i32) -> (i32, i32) {
    %c0_i32 = arith.constant 0 : i32
    %c0_i32_0 = arith.constant 0 : i32
    return %arg0, %c0_i32 : i32, i32
  }
  func.func @transform_2(%arg0: i32) -> (i32, i32) {
    %c0_i32 = arith.constant 0 : i32
    %c0_i32_0 = arith.constant 0 : i32
    %c0_i32_1 = arith.constant 0 : i32
    return %c0_i32, %c0_i32_0 : i32, i32
  }
  func.func @transform_3(%arg0: i32) -> (i32, i32) {
    %c0_i32 = arith.constant 0 : i32
    %c0_i32_0 = arith.constant 0 : i32
    return %arg0, %c0_i32 : i32, i32
  }
}

</mosaic_0001>

<llo_original>
// kernel: tpu_custom_call.1
$region0: #{tpu_custom_call.1}
  #allocation0 [shape = 'u32[]', space=smem, size = 0x4, offset = 0x4, fixed_abs, tag = 'smem constant byte address 0x4 - core index']
  #allocation1 [shape = 'u32[144,128]{1,0:T(1,128)}', space=vmem, size = 0x12000, scoped, tag = 'internal scratch']
  %s0 = inlined_call_operand.vmem [shape: f32[16,32], index: 0, kind: input, shape index: {}]
  %s1 = inlined_call_operand.vmem [shape: s32[16,1], index: 1, kind: input, shape index: {}]
  %s2 = inlined_call_operand.hbm [shape: f32[10,32], index: 2, kind: input, shape index: {}]
  %s3 = inlined_call_operand.hbm [shape: f32[1,128], index: 3, kind: output, shape index: {}]
  %s4 = sld [smem:[#allocation0]]
  $region26: #{tpu_custom_call.1} parent=0
    _
  %s6 = ssub.s32 1, %s4
  %s7 = scalar_select 0, %s6, %s4
  $region1: #{tpu_custom_call.1} parent=0
    #allocation2 [shape = 'u8[8192]{0}', space=vmem, size = 0x2000, scoped, tag = 'input window, operand 2, single buffered']
    #allocation3 [shape = 's32[1]{0}', space=sflag, size = 0x4, scoped, tag = 'scoped memory for tpu_custom_call.1']
    #allocation4 [shape = 's32[1]{0}', space=sflag, size = 0x4, scoped, tag = 'scoped memory for tpu_custom_call.1']
    #allocation5 [shape = 'u8[512]{0}', space=vmem, size = 0x400, scoped, tag = 'output window, operand 0, single buffered']
    %8 = vsyncpa [#allocation3], 0
    %9 = vsyncpa [#allocation4], 0
    // Predicated region
    $region2: #{tpu_custom_call.1} parent=1 // pred_check
      _
    $region3: #{tpu_custom_call.1} parent=1 // pred_check_branch
      %11 = sbr.rel (0) target = $region5
    $region4: #{tpu_custom_call.1} parent=1 // pred_region
      _
    $region5: #{tpu_custom_call.1} parent=1 // pred_fallthru
      _
    // Predicated region
    $region6: #{tpu_custom_call.1} parent=1 // pred_check
      _
    $region7: #{tpu_custom_call.1} parent=1 // pred_check_branch
      %13 = sbr.rel (0) target = $region9
    $region8: #{tpu_custom_call.1} parent=1 // pred_region
      _
    $region9: #{tpu_custom_call.1} parent=1 // pred_fallthru
      _
    // Predicated region
    $region10: #{tpu_custom_call.1} parent=1 // pred_check
      _
    $region11: #{tpu_custom_call.1} parent=1 // pred_check_branch
      %15 = sbr.rel (0) target = $region13
    $region12: #{tpu_custom_call.1} parent=1 // pred_region
      %s17 = ssub.s32 256, 256
      %18 = vsyncadd [#allocation3], %s17
      %s19 = sshll.u32 [#allocation2], 4
      %s20 = int_to_ptr.vmem [resolvable:$true] %s19
      %25 = dma.hbm_to_vmem [thread:$0]  %s2, 256, %s20, [#allocation3], 128, 128, 8
    $region13: #{tpu_custom_call.1} parent=1 // pred_fallthru
      _
    // Predicated region
    $region14: #{tpu_custom_call.1} parent=1 // pred_check
      _
    $region15: #{tpu_custom_call.1} parent=1 // pred_check_branch
      %27 = sbr.rel (0) target = $region17
    $region16: #{tpu_custom_call.1} parent=1 // pred_region
      %28 = dma.done [#allocation3], 256
    $region17: #{tpu_custom_call.1} parent=1 // pred_fallthru
      _
    %v29 = vld [vmem:[%s0] sm:$0xff]
    %v30 = vld [vmem:[%s0 + $0x8] sm:$0xff]
    %v31 = vld [vmem:[%s1] sm:$0xff]
    %v32 = vld [vmem:[%s1 + $0x8] sm:$0xff]
    %v33 = vld [vmem:[#allocation2] sm:$0xff]
    %v34 = vld [vmem:[#allocation2 + $0x8] sm:$0x3]
    %v35 = vlaneseq
    %v36 = vand.u32 %v35, 127
    %37 = vset.pattern.permute.xlu0 0
    %38 = vperm.xlu0 %37, %v31
    %v39 = vpop.permute.xlu0 %38
    %40 = vset.pattern.permute.xlu0 0
    %41 = vperm.xlu0 %40, %v32
    %v42 = vpop.permute.xlu0 %41
    %vm43 = vcmp.eq.s32.totalorder %v36, %v39
    %vm44 = vcmp.eq.s32.totalorder %v36, %v42
    %v45 = vsel %vm43, 1, 0
    %v46 = vsel %vm44, 1, 0
    %v47 = vcvt.s32.f32 %v45
    %v48 = vcvt.s32.f32 %v46
    %vm49 = vcmask 80896
    %v51 = vsel %vm49, %v47, 0
    %v54 = vsel %vm49, %v48, 0
    %vm56 = vcmask 1041408
    %v58 = vsel %vm56, %v34, 0
    %60 = vmatprep.subr.mxu0 0.0
    %61 = vmatpush1.msra.mxu0 0.0
    %62 = vmatprep.subr.mxu0 0.0
    %63 = vmatpush1.msra.mxu0 0.0
    %64 = vmatprep.subr.mxu0 0.0
    %65 = vmatpush1.msra.mxu0 0.0
    %66 = vmatprep.subr.mxu0 0.0
    %67 = vmatpush1.msra.mxu0 0.0
    %68 = vmatprep.subr.mxu0 0.0
    %69 = vmatpush1.msra.mxu0 0.0
    %70 = vmatprep.subr.mxu0 0.0
    %71 = vmatpush1.msra.mxu0 0.0
    %72 = vmatprep.subr.mxu0 0.0
    %73 = vmatpush1.msra.mxu0 0.0
    %74 = vmatprep.subr.mxu0 0.0
    %75 = vmatpush1.msra.mxu0 0.0
    %76 = vmatprep.subr.mxu0 0.0
    %77 = vmatpush1.msra.mxu0 0.0
    %78 = vmatprep.subr.mxu0 0.0
    %79 = vmatpush1.msra.mxu0 0.0
    %80 = vmatprep.subr.mxu0 0.0
    %81 = vmatpush1.msra.mxu0 0.0
    %82 = vmatprep.subr.mxu0 0.0
    %83 = vmatpush1.msra.mxu0 0.0
    %84 = vmatprep.subr.mxu0 0.0
    %85 = vmatpush1.msra.mxu0 0.0
    %86 = vmatprep.subr.mxu0 0.0
    %87 = vmatpush1.msra.mxu0 0.0
    %88 = vmatprep.subr.mxu0 0.0
    %89 = vmatpush1.msra.mxu0 %v58
    %90 = vmatprep.subr.mxu0 0.0
    %91 = vmatpush1.msra.mxu0 %v33
    %92 = vmatprep.subr.mxu0 0.0
    %93 = vmatpush2.msra.mxu0 0.0
    %94 = vmatprep.subr.mxu0 0.0
    %95 = vmatpush2.msra.mxu0 0.0
    %96 = vmatprep.subr.mxu0 0.0
    %97 = vmatpush2.msra.mxu0 0.0
    %98 = vmatprep.subr.mxu0 0.0
    %99 = vmatpush2.msra.mxu0 0.0
    %100 = vmatprep.subr.mxu0 0.0
    %101 = vmatpush2.msra.mxu0 0.0
    %102 = vmatprep.subr.mxu0 0.0
    %103 = vmatpush2.msra.mxu0 0.0
    %104 = vmatprep.subr.mxu0 0.0
    %105 = vmatpush2.msra.mxu0 0.0
    %106 = vmatprep.subr.mxu0 0.0
    %107 = vmatpush2.msra.mxu0 0.0
    %108 = vmatprep.subr.mxu0 0.0
    %109 = vmatpush2.msra.mxu0 0.0
    %110 = vmatprep.subr.mxu0 0.0
    %111 = vmatpush2.msra.mxu0 0.0
    %112 = vmatprep.subr.mxu0 0.0
    %113 = vmatpush2.msra.mxu0 0.0
    %114 = vmatprep.subr.mxu0 0.0
    %115 = vmatpush2.msra.mxu0 0.0
    %116 = vmatprep.subr.mxu0 0.0
    %117 = vmatpush2.msra.mxu0 0.0
    %118 = vmatprep.subr.mxu0 0.0
    %119 = vmatpush2.msra.mxu0 0.0
    %120 = vmatprep.subr.mxu0 0.0
    %121 = vmatpush2.msra.mxu0 0.0
    %122 = vmatprep.subr.mxu0 0.0
    %123 = vmatpush2.msra.mxu0 0.0
    %124 = vmatprep.mubr.f32.mxu0 0.0
    %125 = vmatmul.mubr.f32.gmra.mxu0 %v51
    %v126 = vpop.f32.mrf.mxu0
    %v127 = vadd.f32 0.0, %v126
    %v128 = vpop.f32.mrf.mxu0
    %129 = vmatprep.mubr.f32.mxu0 0.0
    %130 = vmatmul.mubr.f32.gmra.mxu0 %v54
    %v131 = vpop.f32.mrf.mxu0
    %v132 = vadd.f32 0.0, %v131
    %v133 = vpop.f32.mrf.mxu0
    %134 = vdwg.mxu0
    %v135 = vsub.f32 %v29, %v127
    %v136 = vsub.f32 %v30, %v132
    %v137 = vmul.f32 %v135, %v135
    %v138 = vmul.f32 %v136, %v136
    %vm139 = vcmask 261120
    %v140 = vsel %vm139, %v137, 0.0
    %v141 = vsel %vm139, %v138, 0.0
    %v142 = vadd.f32 %v140, %v141
    %143 = vadd.xlane.f32.xlu0 %v142
    %v144 = vpop.xlane.xlu0 %143
    %v145 = vrot.slane %v144, 4
    %v146 = vadd.f32 %v144, %v145
    %v147 = vrot.slane %v146, 2
    %v148 = vadd.f32 %v146, %v147
    %v149 = vrot.slane %v148, 1
    %v150 = vadd.f32 %v148, %v149
    %s151 = vtos %v150
    %v152 = vstv %s151
    %153 = vst [vmem:[#allocation5] sm:$0x1] %v152
    // Predicated region
    $region18: #{tpu_custom_call.1} parent=1 // pred_check
      _
    $region19: #{tpu_custom_call.1} parent=1 // pred_check_branch
      %155 = sbr.rel (0) target = $region21
    $region20: #{tpu_custom_call.1} parent=1 // pred_region
      %s157 = ssub.s32 16, 16
      %158 = vsyncadd [#allocation4], %s157
      %s160 = sshll.u32 [#allocation5], 4
      %s161 = int_to_ptr.vmem [resolvable:$true] %s160
      %163 = dma.vmem_to_hbm [thread:$0]  %s161, 16, %s3, [#allocation4]
    $region21: #{tpu_custom_call.1} parent=1 // pred_fallthru
      _
    // Predicated region
    $region22: #{tpu_custom_call.1} parent=1 // pred_check
      _
    $region23: #{tpu_custom_call.1} parent=1 // pred_check_branch
      %165 = sbr.rel (0) target = $region25
    $region24: #{tpu_custom_call.1} parent=1 // pred_region
      %166 = dma.done [#allocation4], 16
    $region25: #{tpu_custom_call.1} parent=1 // pred_fallthru
      _
    %167 = vsyncpa [#allocation3], 1
    %168 = vsyncpa [#allocation4], 1

</llo_original>
